<compile_context>
chip_gen: v6e
topology: v6e:2x2x1
jax: 0.10.0
libtpu: 0.0.40
codegen_flags: <defaults>
</compile_context>

<pallas_src>
import functools
import math

import jax
import jax.numpy as jnp
from jax.experimental import pallas as pl
from jax.experimental.pallas import tpu as pltpu


# ----------------------------------------------------------------------------
# Tiled matmul kernel (fused q|k|v|res projection)
# ----------------------------------------------------------------------------
def _matmul_kernel(x_ref, w_ref, o_ref, acc_ref):
    @pl.when(pl.program_id(2) == 0)
    def _():
        acc_ref[...] = jnp.zeros_like(acc_ref)

    acc_ref[...] += jnp.dot(x_ref[...], w_ref[...],
                            preferred_element_type=jnp.float32)

    @pl.when(pl.program_id(2) == pl.num_programs(2) - 1)
    def _():
        o_ref[...] = acc_ref[...].astype(o_ref.dtype)


def pallas_matmul(x, w, *, tm=256, tn=256, tk=256, out_dtype=jnp.float32):
    """[M, K] @ [K, N] -> [M, N], tiled, bf16-friendly, f32 accumulation."""
    m, k = x.shape
    k2, n = w.shape
    assert k == k2
    tm = min(tm, m)
    tn = min(tn, n)
    tk = min(tk, k)
    grid = (pl.cdiv(m, tm), pl.cdiv(n, tn), pl.cdiv(k, tk))
    return pl.pallas_call(
        _matmul_kernel,
        out_shape=jax.ShapeDtypeStruct((m, n), out_dtype),
        grid_spec=pltpu.PrefetchScalarGridSpec(
            num_scalar_prefetch=0,
            grid=grid,
            in_specs=[
                pl.BlockSpec((tm, tk), lambda i, j, kk: (i, kk)),
                pl.BlockSpec((tk, tn), lambda i, j, kk: (kk, j)),
            ],
            out_specs=pl.BlockSpec((tm, tn), lambda i, j, kk: (i, j)),
            scratch_shapes=[pltpu.VMEM((tm, tn), jnp.float32)],
        ),
        compiler_params=pltpu.CompilerParams(
            dimension_semantics=("parallel", "parallel", "arbitrary")),
    )(x, w)


# ----------------------------------------------------------------------------
# Graph attention kernel: all heads per grid step, tiled over dst-node blocks
# ----------------------------------------------------------------------------
def _graph_attn_kernel(q_ref, k_ref, v_ref, res_ref, bias_ref, mask_ref,
                       o_ref, *, num_heads, head_dim):
    """One destination-node tile per grid step; all heads processed inside.

    q_ref:    (TQ, H*Dh)  query rows of this tile (scale folded into Wq)
    k_ref:    (N,  H*Dh)  all keys
    v_ref:    (N,  H*Dh)  all values
    res_ref:  (TQ, H*Dh)  projected residual for this tile (f32)
    bias_ref: (H, TQ, N)  per-head relation bias (pre-gathered in glue, f32)
    mask_ref: (TQ, N)     1.0 where edge (dst, src) exists
    o_ref:    (TQ, H*Dh)  lane-dense output slab (attention out + residual)
    """
    mask = mask_ref[...]                                       # [TQ, N] f32
    row_valid = jnp.max(mask, axis=-1, keepdims=True) > 0.0    # [TQ, 1]
    q_all = q_ref[...].astype(jnp.bfloat16)                    # [TQ, H*Dh]
    k_all = k_ref[...].astype(jnp.bfloat16)                    # [N,  H*Dh]
    v_all = v_ref[...].astype(jnp.bfloat16)
    res_all = res_ref[...]                                     # [TQ, H*Dh] f32
    bias = bias_ref[...]                                       # [H, TQ, N] f32

    for h in range(num_heads):                                 # static unroll
        lo = h * head_dim
        hi = lo + head_dim
        qh = q_all[:, lo:hi]                                   # [TQ, Dh] bf16
        kh = k_all[:, lo:hi]                                   # [N,  Dh] bf16
        vh = v_all[:, lo:hi]                                   # [N,  Dh] bf16

        # q @ k^T as an NT dot_general (no in-kernel transpose), f32 acc.
        scores = jax.lax.dot_general(
            qh, kh, (((1,), (1,)), ((), ())),
            preferred_element_type=jnp.float32)                # [TQ, N]
        scores = scores + bias[h]
        # single masking pass: masked scores -> -1e30, exp underflows to 0
        scores = jnp.where(mask > 0.0, scores, jnp.float32(-1e30))
        m = jnp.max(scores, axis=-1, keepdims=True)
        p = jnp.exp(scores - m)
        s = jnp.sum(p, axis=-1, keepdims=True)                 # >= 1
        attn = p * pl.reciprocal(s, approx=True)               # EUP recip

        out_h = jnp.dot(attn.astype(jnp.bfloat16), vh,
                        preferred_element_type=jnp.float32)    # [TQ, Dh]
        # zero-in-degree rows produce 0 (matches masked edge-softmax)
        out_h = jnp.where(row_valid, out_h, 0.0)
        o_ref[:, lo:hi] = (out_h + res_all[:, lo:hi]).astype(o_ref.dtype)


def pallas_graph_attention(q, k, v, res, bias_hnn, mask, *, num_heads,
                           head_dim):
    """q/k/v/res: [N, H*Dh]; bias_hnn: [H, N, N]; mask: [N, N]."""
    n, hd = q.shape
    h = bias_hnn.shape[0]
    assert hd == num_heads * head_dim and h == num_heads
    tq = 128 if n % 128 == 0 else n        # dst-node tile (parallel axis)
    grid = (n // tq,)
    kernel = functools.partial(_graph_attn_kernel,
                               num_heads=num_heads, head_dim=head_dim)
    return pl.pallas_call(
        kernel,
        out_shape=jax.ShapeDtypeStruct((n, hd), jnp.float32),
        grid=grid,
        in_specs=[
            pl.BlockSpec((tq, hd), lambda i: (i, 0)),        # q rows of tile
            pl.BlockSpec((n, hd), lambda i: (0, 0)),         # all k
            pl.BlockSpec((n, hd), lambda i: (0, 0)),         # all v
            pl.BlockSpec((tq, hd), lambda i: (i, 0)),        # residual rows
            pl.BlockSpec((h, tq, n), lambda i: (0, i, 0)),   # per-head bias
            pl.BlockSpec((tq, n), lambda i: (i, 0)),         # adjacency mask
        ],
        out_specs=pl.BlockSpec((tq, hd), lambda i: (i, 0)),
        compiler_params=pltpu.CompilerParams(
            dimension_semantics=("parallel",)),
    )(q, k, v, res, bias_hnn, mask)


# ----------------------------------------------------------------------------
# Model glue (plain JAX): params, rel-bias precompute/gather, layer stacking
# ----------------------------------------------------------------------------
def init_params(key, num_layers, rel_num, pred_dim, in_dim, num_hidden, heads):
    params = {"layers": []}
    key, k_emb = jax.random.split(key)
    params["rel_emb"] = 0.1 * jax.random.normal(
        k_emb, (rel_num, pred_dim), jnp.float32)

    scale = 1.0 / math.sqrt(num_hidden)   # 1/sqrt(Dh) folded into Wq
    dims_in = [in_dim] + [num_hidden * heads[l] for l in range(num_layers - 1)]
    for l in range(num_layers):
        din = dims_in[l]
        dout = num_hidden * heads[l]
        keys = jax.random.split(jax.random.fold_in(key, l), 5)
        wq = 0.1 * jax.random.normal(keys[0], (din, dout), jnp.float32)
        wk = 0.1 * jax.random.normal(keys[1], (din, dout), jnp.float32)
        wv = 0.1 * jax.random.normal(keys[2], (din, dout), jnp.float32)
        wres = 0.1 * jax.random.normal(keys[4], (din, dout), jnp.float32)
        layer = {
            # fused q|k|v|res projection weight, attention scale pre-folded
            "Wqkvr": jnp.concatenate([wq * scale, wk, wv, wres], axis=1),
            "We": 0.1 * jax.random.normal(keys[3], (heads[l], pred_dim),
                                          jnp.float32),
        }
        params["layers"].append(layer)
    return params


def gt_layer_forward(h, etypes, mask, layer_params, rel_emb, num_heads,
                     num_hidden):
    hd = num_heads * num_hidden

    # Relation bias: rel_bias[r, h] = sum_p rel_emb[r, p] * We[h, p]
    # (tiny glue matmul), then gather to [H, N, N] — replaces the [N,N,P]
    # edge-feature tensor and the in-kernel contraction over P.
    rel_bias = jnp.dot(rel_emb, layer_params["We"].T)          # [rel_num, H]
    bias_hnn = jnp.take(rel_bias.T, etypes, axis=1)            # [H, N, N]

    # Single fused projection: h @ [Wq*scale | Wk | Wv | Wres], bf16 MXU path.
    proj = pallas_matmul(h.astype(jnp.bfloat16),
                         layer_params["Wqkvr"].astype(jnp.bfloat16))  # [N,4HD]
    q = proj[:, 0 * hd:1 * hd]
    k = proj[:, 1 * hd:2 * hd]
    v = proj[:, 2 * hd:3 * hd]
    res = proj[:, 3 * hd:4 * hd]

    # Attention + residual fused in one kernel; output already [N, H*Dh].
    return pallas_graph_attention(q, k, v, res, bias_hnn, mask,
                                  num_heads=num_heads, head_dim=num_hidden)


def gtranbrel_feat_forward(params, blocks, inputs, num_layers, heads,
                           num_hidden):
    """blocks: list of (etypes [N,N] int32, adj_mask [N,N] float32)."""
    h = inputs
    for l in range(num_layers):
        etypes, mask = blocks[l]
        h = gt_layer_forward(h, etypes, mask, params["layers"][l],
                             params["rel_emb"], heads[l], num_hidden)
    return h


# ----------------------------------------------------------------------------
if __name__ == "__main__":
    # small, MXU/VPU-friendly shapes
    num_layers = 2
    rel_num = 5
    pred_dim = 8
    in_dim = 32
    num_hidden = 16
    heads = [2, 2]
    N = 16   # nodes per block

    root = jax.random.PRNGKey(0)
    k_par, k_x, k_graph = jax.random.split(root, 3)

    params = init_params(k_par, num_layers, rel_num, pred_dim, in_dim,
                         num_hidden, heads)

    inputs = jax.random.normal(k_x, (N, in_dim), jnp.float32)

    blocks = []
    for l in range(num_layers):
        kg = jax.random.fold_in(k_graph, l)
        k_e, k_m = jax.random.split(kg)
        etypes = jax.random.randint(k_e, (N, N), 0, rel_num, jnp.int32)
        adj = (jax.random.uniform(k_m, (N, N)) > 0.5).astype(jnp.float32)
        adj = jnp.maximum(adj, jnp.eye(N, dtype=jnp.float32))  # self loops
        blocks.append((etypes, adj))

    fwd = jax.jit(lambda p, b, x: gtranbrel_feat_forward(
        p, b, x, num_layers, heads, num_hidden))
    out = fwd(params, blocks, inputs)
    out = jax.block_until_ready(out)
    assert out.shape == (N, num_hidden * heads[-1]), out.shape
    assert jnp.all(jnp.isfinite(out))
    print("KERNEL_OK")
</pallas_src>

<mosaic_0001>
module attributes {stable_mosaic.version = 11 : i64} {
  func.func @_matmul_kernel(%arg0: i32, %arg1: i32, %arg2: i32, %arg3: memref<16x32xbf16, #tpu.memory_space<vmem>>, %arg4: memref<32x128xbf16, #tpu.memory_space<vmem>>, %arg5: memref<16x128xf32, #tpu.memory_space<vmem>>, %arg6: memref<16x128xf32, #tpu.memory_space<vmem>>) attributes {dimension_semantics = [#tpu.dimension_semantics<parallel>, #tpu.dimension_semantics<parallel>, #tpu.dimension_semantics<arbitrary>], iteration_bounds = array<i64: 1, 1, 1>, scalar_prefetch = 0 : i64, scratch_operands = 1 : i64, tpu.core_type = #tpu.core_type<tc>, window_params = [{transform_indices = @transform_0, window_bounds = array<i64: 16, 32>}, {transform_indices = @transform_1, window_bounds = array<i64: 32, 128>}, {transform_indices = @transform_2, window_bounds = array<i64: 16, 128>}]} {
    %c0_i32 = arith.constant 0 : i32
    %0 = arith.cmpi eq, %arg2, %c0_i32 : i32
    %1 = arith.extui %0 : i1 to i32
    %c0_i32_0 = arith.constant 0 : i32
    %2 = arith.cmpi ne, %1, %c0_i32_0 : i32
    scf.if %2 {
      %cst_10 = arith.constant 0.000000e+00 : f32
      %12 = vector.broadcast %cst_10 : f32 to vector<16x128xf32>
      %c0_11 = arith.constant 0 : index
      %c0_12 = arith.constant 0 : index
      %13 = vector.load %arg6[%c0_11, %c0_12] : memref<16x128xf32, #tpu.memory_space<vmem>>, vector<16x128xf32>
      tpu.vector_store %arg6[%c0_11, %c0_12], %12 {strides = array<i32>} : memref<16x128xf32, #tpu.memory_space<vmem>>, vector<16x128xf32>,
    } else {
    }
    %c0 = arith.constant 0 : index
    %c0_1 = arith.constant 0 : index
    %3 = vector.load %arg6[%c0, %c0_1] : memref<16x128xf32, #tpu.memory_space<vmem>>, vector<16x128xf32>
    %c0_2 = arith.constant 0 : index
    %c0_3 = arith.constant 0 : index
    %4 = vector.load %arg3[%c0_2, %c0_3] : memref<16x32xbf16, #tpu.memory_space<vmem>>, vector<16x32xbf16>
    %c0_4 = arith.constant 0 : index
    %c0_5 = arith.constant 0 : index
    %5 = vector.load %arg4[%c0_4, %c0_5] : memref<32x128xbf16, #tpu.memory_space<vmem>>, vector<32x128xbf16>
    %cst = arith.constant dense<0.000000e+00> : vector<16x128xf32>
    %6 = tpu.matmul %4, %5, %cst {dimension_numbers = #tpu.dot_dimension_numbers<[1], [0], [0], [1], [0, 0, 1, 1], [], []>} : vector<16x32xbf16>, vector<32x128xbf16>, vector<16x128xf32> -> vector<16x128xf32>
    %7 = arith.addf %3, %6 : vector<16x128xf32>
    %c0_6 = arith.constant 0 : index
    %c0_7 = arith.constant 0 : index
    %8 = vector.load %arg6[%c0_6, %c0_7] : memref<16x128xf32, #tpu.memory_space<vmem>>, vector<16x128xf32>
    tpu.vector_store %arg6[%c0_6, %c0_7], %7 {strides = array<i32>} : memref<16x128xf32, #tpu.memory_space<vmem>>, vector<16x128xf32>,
    %c0_i32_8 = arith.constant 0 : i32
    %9 = arith.cmpi eq, %arg2, %c0_i32_8 : i32
    %10 = arith.extui %9 : i1 to i32
    %c0_i32_9 = arith.constant 0 : i32
    %11 = arith.cmpi ne, %10, %c0_i32_9 : i32
    scf.if %11 {
      %c0_10 = arith.constant 0 : index
      %c0_11 = arith.constant 0 : index
      %12 = vector.load %arg6[%c0_10, %c0_11] : memref<16x128xf32, #tpu.memory_space<vmem>>, vector<16x128xf32>
      %c0_12 = arith.constant 0 : index
      %c0_13 = arith.constant 0 : index
      %13 = vector.load %arg5[%c0_12, %c0_13] : memref<16x128xf32, #tpu.memory_space<vmem>>, vector<16x128xf32>
      tpu.vector_store %arg5[%c0_12, %c0_13], %12 {strides = array<i32>} : memref<16x128xf32, #tpu.memory_space<vmem>>, vector<16x128xf32>,
    } else {
    }
    return
  }
  func.func @transform_0(%arg0: i32, %arg1: i32, %arg2: i32) -> (i32, i32) {
    %c0_i32 = arith.constant 0 : i32
    return %arg0, %arg2 : i32, i32
  }
  func.func @transform_1(%arg0: i32, %arg1: i32, %arg2: i32) -> (i32, i32) {
    %c0_i32 = arith.constant 0 : i32
    return %arg2, %arg1 : i32, i32
  }
  func.func @transform_2(%arg0: i32, %arg1: i32, %arg2: i32) -> (i32, i32) {
    %c0_i32 = arith.constant 0 : i32
    return %arg0, %arg1 : i32, i32
  }
}

module attributes {stable_mosaic.version = 11 : i64} {
  func.func @_graph_attn_kernel(%arg0: i32, %arg1: memref<16x32xf32, #tpu.memory_space<vmem>>, %arg2: memref<16x32xf32, #tpu.memory_space<vmem>>, %arg3: memref<16x32xf32, #tpu.memory_space<vmem>>, %arg4: memref<16x32xf32, #tpu.memory_space<vmem>>, %arg5: memref<2x16x16xf32, #tpu.memory_space<vmem>>, %arg6: memref<16x16xf32, #tpu.memory_space<vmem>>, %arg7: memref<16x32xf32, #tpu.memory_space<vmem>>) attributes {dimension_semantics = [#tpu.dimension_semantics<parallel>], iteration_bounds = array<i64: 1>, scalar_prefetch = 0 : i64, scratch_operands = 0 : i64, tpu.core_type = #tpu.core_type<tc>, window_params = [{transform_indices = @transform_0, window_bounds = array<i64: 16, 32>}, {pipeline_mode = #tpu.pipeline_mode<synchronous>, transform_indices = @transform_1, window_bounds = array<i64: 16, 32>}, {pipeline_mode = #tpu.pipeline_mode<synchronous>, transform_indices = @transform_2, window_bounds = array<i64: 16, 32>}, {transform_indices = @transform_3, window_bounds = array<i64: 16, 32>}, {transform_indices = @transform_4, window_bounds = array<i64: 2, 16, 16>}, {transform_indices = @transform_5, window_bounds = array<i64: 16, 16>}, {transform_indices = @transform_6, window_bounds = array<i64: 16, 32>}]} {
    %c0 = arith.constant 0 : index
    %c0_0 = arith.constant 0 : index
    %0 = vector.load %arg6[%c0, %c0_0] : memref<16x16xf32, #tpu.memory_space<vmem>>, vector<16x16xf32>
    %cst = arith.constant dense<0xFF800000> : vector<16xf32>
    %1 = vector.multi_reduction <maximumf>, %0, %cst [1] : vector<16x16xf32> to vector<16xf32>
    %2 = vector.shape_cast %1 : vector<16xf32> to vector<16x1xf32>
    %cst_1 = arith.constant 0.000000e+00 : f32
    %3 = vector.broadcast %cst_1 : f32 to vector<16x1xf32>
    %4 = arith.cmpf ogt, %2, %3 : vector<16x1xf32>
    %c0_2 = arith.constant 0 : index
    %c0_3 = arith.constant 0 : index
    %5 = vector.load %arg1[%c0_2, %c0_3] : memref<16x32xf32, #tpu.memory_space<vmem>>, vector<16x32xf32>
    %6 = arith.truncf %5 : vector<16x32xf32> to vector<16x32xbf16>
    %c0_4 = arith.constant 0 : index
    %c0_5 = arith.constant 0 : index
    %7 = vector.load %arg2[%c0_4, %c0_5] : memref<16x32xf32, #tpu.memory_space<vmem>>, vector<16x32xf32>
    %8 = arith.truncf %7 : vector<16x32xf32> to vector<16x32xbf16>
    %c0_6 = arith.constant 0 : index
    %c0_7 = arith.constant 0 : index
    %9 = vector.load %arg3[%c0_6, %c0_7] : memref<16x32xf32, #tpu.memory_space<vmem>>, vector<16x32xf32>
    %10 = arith.truncf %9 : vector<16x32xf32> to vector<16x32xbf16>
    %c0_8 = arith.constant 0 : index
    %c0_9 = arith.constant 0 : index
    %11 = vector.load %arg4[%c0_8, %c0_9] : memref<16x32xf32, #tpu.memory_space<vmem>>, vector<16x32xf32>
    %c0_10 = arith.constant 0 : index
    %c0_11 = arith.constant 0 : index
    %c0_12 = arith.constant 0 : index
    %12 = vector.load %arg5[%c0_10, %c0_11, %c0_12] : memref<2x16x16xf32, #tpu.memory_space<vmem>>, vector<2x16x16xf32>
    %13 = vector.extract_strided_slice %6 {offsets = [0, 0], sizes = [16, 16], strides = [1, 1]} : vector<16x32xbf16> to vector<16x16xbf16>
    %14 = vector.extract_strided_slice %8 {offsets = [0, 0], sizes = [16, 16], strides = [1, 1]} : vector<16x32xbf16> to vector<16x16xbf16>
    %15 = vector.extract_strided_slice %10 {offsets = [0, 0], sizes = [16, 16], strides = [1, 1]} : vector<16x32xbf16> to vector<16x16xbf16>
    %cst_13 = arith.constant dense<0.000000e+00> : vector<16x16xf32>
    %16 = tpu.matmul %13, %14, %cst_13 {dimension_numbers = #tpu.dot_dimension_numbers<[1], [1], [0], [0], [0, 0, 1, 0], [], []>} : vector<16x16xbf16>, vector<16x16xbf16>, vector<16x16xf32> -> vector<16x16xf32>
    %17 = vector.extract_strided_slice %12 {offsets = [0, 0, 0], sizes = [1, 16, 16], strides = [1, 1, 1]} : vector<2x16x16xf32> to vector<1x16x16xf32>
    %18 = vector.shape_cast %17 : vector<1x16x16xf32> to vector<16x16xf32>
    %19 = arith.addf %16, %18 : vector<16x16xf32>
    %cst_14 = arith.constant 0.000000e+00 : f32
    %20 = vector.broadcast %cst_14 : f32 to vector<16x16xf32>
    %21 = arith.cmpf ogt, %0, %20 : vector<16x16xf32>
    %cst_15 = arith.constant -1.000000e+30 : f32
    %22 = vector.broadcast %cst_15 : f32 to vector<16x16xf32>
    %23 = arith.select %21, %19, %22 : vector<16x16xi1>, vector<16x16xf32>
    %cst_16 = arith.constant dense<0xFF800000> : vector<16xf32>
    %24 = vector.multi_reduction <maximumf>, %23, %cst_16 [1] : vector<16x16xf32> to vector<16xf32>
    %25 = vector.shape_cast %24 : vector<16xf32> to vector<16x1xf32>
    %26 = vector.broadcast %25 : vector<16x1xf32> to vector<16x16xf32>
    %27 = arith.subf %23, %26 : vector<16x16xf32>
    %28 = math.exp %27 : vector<16x16xf32>
    %cst_17 = arith.constant dense<0.000000e+00> : vector<16xf32>
    %29 = vector.multi_reduction <add>, %28, %cst_17 [1] : vector<16x16xf32> to vector<16xf32>
    %30 = vector.shape_cast %29 : vector<16xf32> to vector<16x1xf32>
    %31 = tpu.reciprocal %30 {approx = true} : vector<16x1xf32> -> vector<16x1xf32>
    %32 = vector.broadcast %31 : vector<16x1xf32> to vector<16x16xf32>
    %33 = arith.mulf %28, %32 : vector<16x16xf32>
    %34 = arith.truncf %33 : vector<16x16xf32> to vector<16x16xbf16>
    %cst_18 = arith.constant dense<0.000000e+00> : vector<16x16xf32>
    %35 = tpu.matmul %34, %15, %cst_18 {dimension_numbers = #tpu.dot_dimension_numbers<[1], [0], [0], [1], [0, 0, 1, 1], [], []>} : vector<16x16xbf16>, vector<16x16xbf16>, vector<16x16xf32> -> vector<16x16xf32>
    %cst_19 = arith.constant 0.000000e+00 : f32
    %36 = vector.shape_cast %4 : vector<16x1xi1> to vector<16x1xi1>
    %37 = vector.broadcast %36 : vector<16x1xi1> to vector<16x16xi1>
    %38 = vector.broadcast %cst_19 : f32 to vector<16x16xf32>
    %39 = arith.select %37, %35, %38 : vector<16x16xi1>, vector<16x16xf32>
    %40 = vector.extract_strided_slice %11 {offsets = [0, 0], sizes = [16, 16], strides = [1, 1]} : vector<16x32xf32> to vector<16x16xf32>
    %41 = arith.addf %39, %40 : vector<16x16xf32>
    %c0_20 = arith.constant 0 : index
    %c0_21 = arith.constant 0 : index
    %42 = vector.load %arg7[%c0_20, %c0_21] : memref<16x32xf32, #tpu.memory_space<vmem>>, vector<16x16xf32>
    tpu.vector_store %arg7[%c0_20, %c0_21], %41 {strides = array<i32>} : memref<16x32xf32, #tpu.memory_space<vmem>>, vector<16x16xf32>,
    %43 = vector.extract_strided_slice %6 {offsets = [0, 16], sizes = [16, 16], strides = [1, 1]} : vector<16x32xbf16> to vector<16x16xbf16>
    %44 = vector.extract_strided_slice %8 {offsets = [0, 16], sizes = [16, 16], strides = [1, 1]} : vector<16x32xbf16> to vector<16x16xbf16>
    %45 = vector.extract_strided_slice %10 {offsets = [0, 16], sizes = [16, 16], strides = [1, 1]} : vector<16x32xbf16> to vector<16x16xbf16>
    %cst_22 = arith.constant dense<0.000000e+00> : vector<16x16xf32>
    %46 = tpu.matmul %43, %44, %cst_22 {dimension_numbers = #tpu.dot_dimension_numbers<[1], [1], [0], [0], [0, 0, 1, 0], [], []>} : vector<16x16xbf16>, vector<16x16xbf16>, vector<16x16xf32> -> vector<16x16xf32>
    %47 = vector.extract_strided_slice %12 {offsets = [1, 0, 0], sizes = [1, 16, 16], strides = [1, 1, 1]} : vector<2x16x16xf32> to vector<1x16x16xf32>
    %48 = vector.shape_cast %47 : vector<1x16x16xf32> to vector<16x16xf32>
    %49 = arith.addf %46, %48 : vector<16x16xf32>
    %cst_23 = arith.constant 0.000000e+00 : f32
    %50 = vector.broadcast %cst_23 : f32 to vector<16x16xf32>
    %51 = arith.cmpf ogt, %0, %50 : vector<16x16xf32>
    %cst_24 = arith.constant -1.000000e+30 : f32
    %52 = vector.broadcast %cst_24 : f32 to vector<16x16xf32>
    %53 = arith.select %51, %49, %52 : vector<16x16xi1>, vector<16x16xf32>
    %cst_25 = arith.constant dense<0xFF800000> : vector<16xf32>
    %54 = vector.multi_reduction <maximumf>, %53, %cst_25 [1] : vector<16x16xf32> to vector<16xf32>
    %55 = vector.shape_cast %54 : vector<16xf32> to vector<16x1xf32>
    %56 = vector.broadcast %55 : vector<16x1xf32> to vector<16x16xf32>
    %57 = arith.subf %53, %56 : vector<16x16xf32>
    %58 = math.exp %57 : vector<16x16xf32>
    %cst_26 = arith.constant dense<0.000000e+00> : vector<16xf32>
    %59 = vector.multi_reduction <add>, %58, %cst_26 [1] : vector<16x16xf32> to vector<16xf32>
    %60 = vector.shape_cast %59 : vector<16xf32> to vector<16x1xf32>
    %61 = tpu.reciprocal %60 {approx = true} : vector<16x1xf32> -> vector<16x1xf32>
    %62 = vector.broadcast %61 : vector<16x1xf32> to vector<16x16xf32>
    %63 = arith.mulf %58, %62 : vector<16x16xf32>
    %64 = arith.truncf %63 : vector<16x16xf32> to vector<16x16xbf16>
    %cst_27 = arith.constant dense<0.000000e+00> : vector<16x16xf32>
    %65 = tpu.matmul %64, %45, %cst_27 {dimension_numbers = #tpu.dot_dimension_numbers<[1], [0], [0], [1], [0, 0, 1, 1], [], []>} : vector<16x16xbf16>, vector<16x16xbf16>, vector<16x16xf32> -> vector<16x16xf32>
    %cst_28 = arith.constant 0.000000e+00 : f32
    %66 = vector.shape_cast %4 : vector<16x1xi1> to vector<16x1xi1>
    %67 = vector.broadcast %66 : vector<16x1xi1> to vector<16x16xi1>
    %68 = vector.broadcast %cst_28 : f32 to vector<16x16xf32>
    %69 = arith.select %67, %65, %68 : vector<16x16xi1>, vector<16x16xf32>
    %70 = vector.extract_strided_slice %11 {offsets = [0, 16], sizes = [16, 16], strides = [1, 1]} : vector<16x32xf32> to vector<16x16xf32>
    %71 = arith.addf %69, %70 : vector<16x16xf32>
    %c0_29 = arith.constant 0 : index
    %c16 = arith.constant 16 : index
    %72 = vector.load %arg7[%c0_29, %c16] : memref<16x32xf32, #tpu.memory_space<vmem>>, vector<16x16xf32>
    tpu.vector_store %arg7[%c0_29, %c16], %71 {strides = array<i32>} : memref<16x32xf32, #tpu.memory_space<vmem>>, vector<16x16xf32>,
    return
  }
  func.func @transform_0(%arg0: i32) -> (i32, i32) {
    %c0_i32 = arith.constant 0 : i32
    %c0_i32_0 = arith.constant 0 : i32
    return %arg0, %c0_i32 : i32, i32
  }
  func.func @transform_1(%arg0: i32) -> (i32, i32) {
    %c0_i32 = arith.constant 0 : i32
    %c0_i32_0 = arith.constant 0 : i32
    %c0_i32_1 = arith.constant 0 : i32
    return %c0_i32, %c0_i32_0 : i32, i32
  }
  func.func @transform_2(%arg0: i32) -> (i32, i32) {
    %c0_i32 = arith.constant 0 : i32
    %c0_i32_0 = arith.constant 0 : i32
    %c0_i32_1 = arith.constant 0 : i32
    return %c0_i32, %c0_i32_0 : i32, i32
  }
  func.func @transform_3(%arg0: i32) -> (i32, i32) {
    %c0_i32 = arith.constant 0 : i32
    %c0_i32_0 = arith.constant 0 : i32
    return %arg0, %c0_i32 : i32, i32
  }
  func.func @transform_4(%arg0: i32) -> (i32, i32, i32) {
    %c0_i32 = arith.constant 0 : i32
    %c0_i32_0 = arith.constant 0 : i32
    %c0_i32_1 = arith.constant 0 : i32
    return %c0_i32, %arg0, %c0_i32_0 : i32, i32, i32
  }
  func.func @transform_5(%arg0: i32) -> (i32, i32) {
    %c0_i32 = arith.constant 0 : i32
    %c0_i32_0 = arith.constant 0 : i32
    return %arg0, %c0_i32 : i32, i32
  }
  func.func @transform_6(%arg0: i32) -> (i32, i32) {
    %c0_i32 = arith.constant 0 : i32
    %c0_i32_0 = arith.constant 0 : i32
    return %arg0, %c0_i32 : i32, i32
  }
}

module attributes {stable_mosaic.version = 11 : i64} {
  func.func @_graph_attn_kernel(%arg0: i32, %arg1: memref<16x32xf32, #tpu.memory_space<vmem>>, %arg2: memref<16x32xf32, #tpu.memory_space<vmem>>, %arg3: memref<16x32xf32, #tpu.memory_space<vmem>>, %arg4: memref<16x32xf32, #tpu.memory_space<vmem>>, %arg5: memref<2x16x16xf32, #tpu.memory_space<vmem>>, %arg6: memref<16x16xf32, #tpu.memory_space<vmem>>, %arg7: memref<16x32xf32, #tpu.memory_space<vmem>>) attributes {dimension_semantics = [#tpu.dimension_semantics<parallel>], iteration_bounds = array<i64: 1>, scalar_prefetch = 0 : i64, scratch_operands = 0 : i64, tpu.core_type = #tpu.core_type<tc>, window_params = [{transform_indices = @transform_0, window_bounds = array<i64: 16, 32>}, {pipeline_mode = #tpu.pipeline_mode<synchronous>, transform_indices = @transform_1, window_bounds = array<i64: 16, 32>}, {pipeline_mode = #tpu.pipeline_mode<synchronous>, transform_indices = @transform_2, window_bounds = array<i64: 16, 32>}, {transform_indices = @transform_3, window_bounds = array<i64: 16, 32>}, {transform_indices = @transform_4, window_bounds = array<i64: 2, 16, 16>}, {transform_indices = @transform_5, window_bounds = array<i64: 16, 16>}, {transform_indices = @transform_6, window_bounds = array<i64: 16, 32>}]} {
    %c0 = arith.constant 0 : index
    %c0_0 = arith.constant 0 : index
    %0 = vector.load %arg6[%c0, %c0_0] : memref<16x16xf32, #tpu.memory_space<vmem>>, vector<16x16xf32>
    %cst = arith.constant dense<0xFF800000> : vector<16xf32>
    %1 = vector.multi_reduction <maximumf>, %0, %cst [1] : vector<16x16xf32> to vector<16xf32>
    %2 = vector.shape_cast %1 : vector<16xf32> to vector<16x1xf32>
    %cst_1 = arith.constant 0.000000e+00 : f32
    %3 = vector.broadcast %cst_1 : f32 to vector<16x1xf32>
    %4 = arith.cmpf ogt, %2, %3 : vector<16x1xf32>
    %c0_2 = arith.constant 0 : index
    %c0_3 = arith.constant 0 : index
    %5 = vector.load %arg1[%c0_2, %c0_3] : memref<16x32xf32, #tpu.memory_space<vmem>>, vector<16x32xf32>
    %6 = arith.truncf %5 : vector<16x32xf32> to vector<16x32xbf16>
    %c0_4 = arith.constant 0 : index
    %c0_5 = arith.constant 0 : index
    %7 = vector.load %arg2[%c0_4, %c0_5] : memref<16x32xf32, #tpu.memory_space<vmem>>, vector<16x32xf32>
    %8 = arith.truncf %7 : vector<16x32xf32> to vector<16x32xbf16>
    %c0_6 = arith.constant 0 : index
    %c0_7 = arith.constant 0 : index
    %9 = vector.load %arg3[%c0_6, %c0_7] : memref<16x32xf32, #tpu.memory_space<vmem>>, vector<16x32xf32>
    %10 = arith.truncf %9 : vector<16x32xf32> to vector<16x32xbf16>
    %c0_8 = arith.constant 0 : index
    %c0_9 = arith.constant 0 : index
    %11 = vector.load %arg4[%c0_8, %c0_9] : memref<16x32xf32, #tpu.memory_space<vmem>>, vector<16x32xf32>
    %c0_10 = arith.constant 0 : index
    %c0_11 = arith.constant 0 : index
    %c0_12 = arith.constant 0 : index
    %12 = vector.load %arg5[%c0_10, %c0_11, %c0_12] : memref<2x16x16xf32, #tpu.memory_space<vmem>>, vector<2x16x16xf32>
    %13 = vector.extract_strided_slice %6 {offsets = [0, 0], sizes = [16, 16], strides = [1, 1]} : vector<16x32xbf16> to vector<16x16xbf16>
    %14 = vector.extract_strided_slice %8 {offsets = [0, 0], sizes = [16, 16], strides = [1, 1]} : vector<16x32xbf16> to vector<16x16xbf16>
    %15 = vector.extract_strided_slice %10 {offsets = [0, 0], sizes = [16, 16], strides = [1, 1]} : vector<16x32xbf16> to vector<16x16xbf16>
    %cst_13 = arith.constant dense<0.000000e+00> : vector<16x16xf32>
    %16 = tpu.matmul %13, %14, %cst_13 {dimension_numbers = #tpu.dot_dimension_numbers<[1], [1], [0], [0], [0, 0, 1, 0], [], []>} : vector<16x16xbf16>, vector<16x16xbf16>, vector<16x16xf32> -> vector<16x16xf32>
    %17 = vector.extract_strided_slice %12 {offsets = [0, 0, 0], sizes = [1, 16, 16], strides = [1, 1, 1]} : vector<2x16x16xf32> to vector<1x16x16xf32>
    %18 = vector.shape_cast %17 : vector<1x16x16xf32> to vector<16x16xf32>
    %19 = arith.addf %16, %18 : vector<16x16xf32>
    %cst_14 = arith.constant 0.000000e+00 : f32
    %20 = vector.broadcast %cst_14 : f32 to vector<16x16xf32>
    %21 = arith.cmpf ogt, %0, %20 : vector<16x16xf32>
    %cst_15 = arith.constant -1.000000e+30 : f32
    %22 = vector.broadcast %cst_15 : f32 to vector<16x16xf32>
    %23 = arith.select %21, %19, %22 : vector<16x16xi1>, vector<16x16xf32>
    %cst_16 = arith.constant dense<0xFF800000> : vector<16xf32>
    %24 = vector.multi_reduction <maximumf>, %23, %cst_16 [1] : vector<16x16xf32> to vector<16xf32>
    %25 = vector.shape_cast %24 : vector<16xf32> to vector<16x1xf32>
    %26 = vector.broadcast %25 : vector<16x1xf32> to vector<16x16xf32>
    %27 = arith.subf %23, %26 : vector<16x16xf32>
    %28 = math.exp %27 : vector<16x16xf32>
    %cst_17 = arith.constant dense<0.000000e+00> : vector<16xf32>
    %29 = vector.multi_reduction <add>, %28, %cst_17 [1] : vector<16x16xf32> to vector<16xf32>
    %30 = vector.shape_cast %29 : vector<16xf32> to vector<16x1xf32>
    %31 = tpu.reciprocal %30 {approx = true} : vector<16x1xf32> -> vector<16x1xf32>
    %32 = vector.broadcast %31 : vector<16x1xf32> to vector<16x16xf32>
    %33 = arith.mulf %28, %32 : vector<16x16xf32>
    %34 = arith.truncf %33 : vector<16x16xf32> to vector<16x16xbf16>
    %cst_18 = arith.constant dense<0.000000e+00> : vector<16x16xf32>
    %35 = tpu.matmul %34, %15, %cst_18 {dimension_numbers = #tpu.dot_dimension_numbers<[1], [0], [0], [1], [0, 0, 1, 1], [], []>} : vector<16x16xbf16>, vector<16x16xbf16>, vector<16x16xf32> -> vector<16x16xf32>
    %cst_19 = arith.constant 0.000000e+00 : f32
    %36 = vector.shape_cast %4 : vector<16x1xi1> to vector<16x1xi1>
    %37 = vector.broadcast %36 : vector<16x1xi1> to vector<16x16xi1>
    %38 = vector.broadcast %cst_19 : f32 to vector<16x16xf32>
    %39 = arith.select %37, %35, %38 : vector<16x16xi1>, vector<16x16xf32>
    %40 = vector.extract_strided_slice %11 {offsets = [0, 0], sizes = [16, 16], strides = [1, 1]} : vector<16x32xf32> to vector<16x16xf32>
    %41 = arith.addf %39, %40 : vector<16x16xf32>
    %c0_20 = arith.constant 0 : index
    %c0_21 = arith.constant 0 : index
    %42 = vector.load %arg7[%c0_20, %c0_21] : memref<16x32xf32, #tpu.memory_space<vmem>>, vector<16x16xf32>
    tpu.vector_store %arg7[%c0_20, %c0_21], %41 {strides = array<i32>} : memref<16x32xf32, #tpu.memory_space<vmem>>, vector<16x16xf32>,
    %43 = vector.extract_strided_slice %6 {offsets = [0, 16], sizes = [16, 16], strides = [1, 1]} : vector<16x32xbf16> to vector<16x16xbf16>
    %44 = vector.extract_strided_slice %8 {offsets = [0, 16], sizes = [16, 16], strides = [1, 1]} : vector<16x32xbf16> to vector<16x16xbf16>
    %45 = vector.extract_strided_slice %10 {offsets = [0, 16], sizes = [16, 16], strides = [1, 1]} : vector<16x32xbf16> to vector<16x16xbf16>
    %cst_22 = arith.constant dense<0.000000e+00> : vector<16x16xf32>
    %46 = tpu.matmul %43, %44, %cst_22 {dimension_numbers = #tpu.dot_dimension_numbers<[1], [1], [0], [0], [0, 0, 1, 0], [], []>} : vector<16x16xbf16>, vector<16x16xbf16>, vector<16x16xf32> -> vector<16x16xf32>
    %47 = vector.extract_strided_slice %12 {offsets = [1, 0, 0], sizes = [1, 16, 16], strides = [1, 1, 1]} : vector<2x16x16xf32> to vector<1x16x16xf32>
    %48 = vector.shape_cast %47 : vector<1x16x16xf32> to vector<16x16xf32>
    %49 = arith.addf %46, %48 : vector<16x16xf32>
    %cst_23 = arith.constant 0.000000e+00 : f32
    %50 = vector.broadcast %cst_23 : f32 to vector<16x16xf32>
    %51 = arith.cmpf ogt, %0, %50 : vector<16x16xf32>
    %cst_24 = arith.constant -1.000000e+30 : f32
    %52 = vector.broadcast %cst_24 : f32 to vector<16x16xf32>
    %53 = arith.select %51, %49, %52 : vector<16x16xi1>, vector<16x16xf32>
    %cst_25 = arith.constant dense<0xFF800000> : vector<16xf32>
    %54 = vector.multi_reduction <maximumf>, %53, %cst_25 [1] : vector<16x16xf32> to vector<16xf32>
    %55 = vector.shape_cast %54 : vector<16xf32> to vector<16x1xf32>
    %56 = vector.broadcast %55 : vector<16x1xf32> to vector<16x16xf32>
    %57 = arith.subf %53, %56 : vector<16x16xf32>
    %58 = math.exp %57 : vector<16x16xf32>
    %cst_26 = arith.constant dense<0.000000e+00> : vector<16xf32>
    %59 = vector.multi_reduction <add>, %58, %cst_26 [1] : vector<16x16xf32> to vector<16xf32>
    %60 = vector.shape_cast %59 : vector<16xf32> to vector<16x1xf32>
    %61 = tpu.reciprocal %60 {approx = true} : vector<16x1xf32> -> vector<16x1xf32>
    %62 = vector.broadcast %61 : vector<16x1xf32> to vector<16x16xf32>
    %63 = arith.mulf %58, %62 : vector<16x16xf32>
    %64 = arith.truncf %63 : vector<16x16xf32> to vector<16x16xbf16>
    %cst_27 = arith.constant dense<0.000000e+00> : vector<16x16xf32>
    %65 = tpu.matmul %64, %45, %cst_27 {dimension_numbers = #tpu.dot_dimension_numbers<[1], [0], [0], [1], [0, 0, 1, 1], [], []>} : vector<16x16xbf16>, vector<16x16xbf16>, vector<16x16xf32> -> vector<16x16xf32>
    %cst_28 = arith.constant 0.000000e+00 : f32
    %66 = vector.shape_cast %4 : vector<16x1xi1> to vector<16x1xi1>
    %67 = vector.broadcast %66 : vector<16x1xi1> to vector<16x16xi1>
    %68 = vector.broadcast %cst_28 : f32 to vector<16x16xf32>
    %69 = arith.select %67, %65, %68 : vector<16x16xi1>, vector<16x16xf32>
    %70 = vector.extract_strided_slice %11 {offsets = [0, 16], sizes = [16, 16], strides = [1, 1]} : vector<16x32xf32> to vector<16x16xf32>
    %71 = arith.addf %69, %70 : vector<16x16xf32>
    %c0_29 = arith.constant 0 : index
    %c16 = arith.constant 16 : index
    %72 = vector.load %arg7[%c0_29, %c16] : memref<16x32xf32, #tpu.memory_space<vmem>>, vector<16x16xf32>
    tpu.vector_store %arg7[%c0_29, %c16], %71 {strides = array<i32>} : memref<16x32xf32, #tpu.memory_space<vmem>>, vector<16x16xf32>,
    return
  }
  func.func @transform_0(%arg0: i32) -> (i32, i32) {
    %c0_i32 = arith.constant 0 : i32
    %c0_i32_0 = arith.constant 0 : i32
    return %arg0, %c0_i32 : i32, i32
  }
  func.func @transform_1(%arg0: i32) -> (i32, i32) {
    %c0_i32 = arith.constant 0 : i32
    %c0_i32_0 = arith.constant 0 : i32
    %c0_i32_1 = arith.constant 0 : i32
    return %c0_i32, %c0_i32_0 : i32, i32
  }
  func.func @transform_2(%arg0: i32) -> (i32, i32) {
    %c0_i32 = arith.constant 0 : i32
    %c0_i32_0 = arith.constant 0 : i32
    %c0_i32_1 = arith.constant 0 : i32
    return %c0_i32, %c0_i32_0 : i32, i32
  }
  func.func @transform_3(%arg0: i32) -> (i32, i32) {
    %c0_i32 = arith.constant 0 : i32
    %c0_i32_0 = arith.constant 0 : i32
    return %arg0, %c0_i32 : i32, i32
  }
  func.func @transform_4(%arg0: i32) -> (i32, i32, i32) {
    %c0_i32 = arith.constant 0 : i32
    %c0_i32_0 = arith.constant 0 : i32
    %c0_i32_1 = arith.constant 0 : i32
    return %c0_i32, %arg0, %c0_i32_0 : i32, i32, i32
  }
  func.func @transform_5(%arg0: i32) -> (i32, i32) {
    %c0_i32 = arith.constant 0 : i32
    %c0_i32_0 = arith.constant 0 : i32
    return %arg0, %c0_i32 : i32, i32
  }
  func.func @transform_6(%arg0: i32) -> (i32, i32) {
    %c0_i32 = arith.constant 0 : i32
    %c0_i32_0 = arith.constant 0 : i32
    return %arg0, %c0_i32 : i32, i32
  }
}

</mosaic_0001>

<llo_original>
// kernel: _lambda_.4
$region0: #{_lambda_.4}
  #allocation0 [shape = 'u32[]', space=smem, size = 0x4, offset = 0x4, fixed_abs, tag = 'smem constant byte address 0x4 - core index']
  #allocation1 [shape = 'u32[144,128]{1,0:T(1,128)}', space=vmem, size = 0x12000, scoped, tag = 'internal scratch']
  #allocation2 [shape = 'f32[16,128]{1,0:T(8,128)}', space=vmem, size = 0x2000, scoped, tag = 'scratch operand']
  %s0 = inlined_call_operand.vmem [shape: bf16[16,32], index: 0, kind: input, shape index: {}]
  %s1 = inlined_call_operand.vmem [shape: bf16[32,128], index: 1, kind: input, shape index: {}]
  %s2 = inlined_call_operand.vmem [shape: f32[16,128], index: 2, kind: output, shape index: {}]
  %s3 = sld [smem:[#allocation0]]
  $region26: #{_lambda_.4} parent=0
    _
  %s5 = ssub.s32 1, %s3
  %s6 = scalar_select 0, %s5, %s3
  // Predicated region
  $region2: #{_lambda_.4} parent=0 // pred_check
    _
  $region3: #{_lambda_.4} parent=0 // pred_check_branch
    %8 = sbr.rel (0) target = $region5
  $region4: #{_lambda_.4} parent=0 // pred_region
    _
  $region5: #{_lambda_.4} parent=0 // pred_fallthru
    _
  // Predicated region
  $region6: #{_lambda_.4} parent=0 // pred_check
    _
  $region7: #{_lambda_.4} parent=0 // pred_check_branch
    %10 = sbr.rel (0) target = $region9
  $region8: #{_lambda_.4} parent=0 // pred_region
    _
  $region9: #{_lambda_.4} parent=0 // pred_fallthru
    _
  %p12 = scmp.eq.s32.totalorder 0, 0
  // Predicated region
  $region10: #{_lambda_.4} parent=0 // pred_check
    %p13 = pneg %p12
  $region11: #{_lambda_.4} parent=0 // pred_check_branch
    %15 = sbr.rel (%p13) target = $region13
  $region12: #{_lambda_.4} parent=0 // pred_region
    %16 = vst [vmem:[#allocation2] sm:$0xff] 0.0
    %17 = vst [vmem:[#allocation2 + $0x8] sm:$0xff] 0.0
  $region13: #{_lambda_.4} parent=0 // pred_fallthru
    _
  %v18 = vld [vmem:[#allocation2] sm:$0xff]
  %v19 = vld [vmem:[#allocation2 + $0x8] sm:$0xff]
  %v20 = vld [vmem:[%s0] sm:$0xf]
  %v21 = vld [vmem:[%s0 + $0x4] sm:$0xf]
  %v22 = vld [vmem:[%s1] sm:$0xf]
  %v23 = vld [vmem:[%s1 + $0x4] sm:$0xf]
  %v24 = vld [vmem:[%s1 + $0x8] sm:$0xf]
  %v25 = vld [vmem:[%s1 + $0xc] sm:$0xf]
  %v28 = vunpack.c.l.b16 %v20
  %v29 = vunpack.c.l.b16 %v21
  %v30 = vpack.c.b16 %v29, %v28
  %v35 = vunpack.c.l.b16 %v22
  %v36 = vunpack.c.l.b16 %v23
  %v37 = vunpack.c.l.b16 %v24
  %v38 = vunpack.c.l.b16 %v25
  %v39 = vpack.c.b16 %v36, %v35
  %v40 = vpack.c.b16 %v38, %v37
  %vm43 = vcmask 261120
  %v45 = vsel %vm43, %v30, 0
  %47 = vmatprep.subr.bf16.mxu0 0
  %48 = vmatpush1.bf16.msra.mxu0 0
  %49 = vmatprep.subr.bf16.mxu0 0
  %50 = vmatpush1.bf16.msra.mxu0 0
  %51 = vmatprep.subr.bf16.mxu0 0
  %52 = vmatpush1.bf16.msra.mxu0 0
  %53 = vmatprep.subr.bf16.mxu0 0
  %54 = vmatpush1.bf16.msra.mxu0 0
  %55 = vmatprep.subr.bf16.mxu0 0
  %56 = vmatpush1.bf16.msra.mxu0 0
  %57 = vmatprep.subr.bf16.mxu0 0
  %58 = vmatpush1.bf16.msra.mxu0 0
  %59 = vmatprep.subr.bf16.mxu0 0
  %60 = vmatpush1.bf16.msra.mxu0 %v40
  %61 = vmatprep.subr.bf16.mxu0 0
  %62 = vmatpush1.bf16.msra.mxu0 %v39
  %63 = vmatprep.subr.bf16.mxu0 0
  %64 = vmatpush2.bf16.msra.mxu0 0
  %65 = vmatprep.subr.bf16.mxu0 0
  %66 = vmatpush2.bf16.msra.mxu0 0
  %67 = vmatprep.subr.bf16.mxu0 0
  %68 = vmatpush2.bf16.msra.mxu0 0
  %69 = vmatprep.subr.bf16.mxu0 0
  %70 = vmatpush2.bf16.msra.mxu0 0
  %71 = vmatprep.subr.bf16.mxu0 0
  %72 = vmatpush2.bf16.msra.mxu0 0
  %73 = vmatprep.subr.bf16.mxu0 0
  %74 = vmatpush2.bf16.msra.mxu0 0
  %75 = vmatprep.subr.bf16.mxu0 0
  %76 = vmatpush2.bf16.msra.mxu0 0
  %77 = vmatprep.subr.bf16.mxu0 0
  %78 = vmatpush2.bf16.msra.mxu0 0
  %79 = vmatprep.mubr.bf16.mxu0 0
  %80 = vmatmul.mubr.bf16.gmra.mxu0 %v45
  %v81 = vpop.f32.mrf.mxu0
  %v82 = vadd.f32 0.0, %v81
  %v83 = vpop.f32.mrf.mxu0
  %v84 = vpop.f32.mrf.mxu0
  %v85 = vadd.f32 0.0, %v84
  %v86 = vpop.f32.mrf.mxu0
  %87 = vdwg.mxu0
  %v88 = vadd.f32 %v18, %v82
  %v89 = vadd.f32 %v19, %v85
  %90 = vst [vmem:[#allocation2] sm:$0xff] %v88
  %91 = vst [vmem:[#allocation2 + $0x8] sm:$0xff] %v89
  // Predicated region
  $region14: #{_lambda_.4} parent=0 // pred_check
    %p92 = pneg %p12
  $region15: #{_lambda_.4} parent=0 // pred_check_branch
    %94 = sbr.rel (%p92) target = $region17
  $region16: #{_lambda_.4} parent=0 // pred_region
    %v95 = vld [vmem:[#allocation2] sm:$0xff]
    %v96 = vld [vmem:[#allocation2 + $0x8] sm:$0xff]
    %97 = vst [vmem:[%s2] sm:$0xff] %v95
    %98 = vst [vmem:[%s2 + $0x8] sm:$0xff] %v96
  $region17: #{_lambda_.4} parent=0 // pred_fallthru
    _
  // Predicated region
  $region18: #{_lambda_.4} parent=0 // pred_check
    _
  $region19: #{_lambda_.4} parent=0 // pred_check_branch
    %100 = sbr.rel (0) target = $region21
  $region20: #{_lambda_.4} parent=0 // pred_region
    _
  $region21: #{_lambda_.4} parent=0 // pred_fallthru
    _
  // Predicated region
  $region22: #{_lambda_.4} parent=0 // pred_check
    _
  $region23: #{_lambda_.4} parent=0 // pred_check_branch
    %102 = sbr.rel (0) target = $region25
  $region24: #{_lambda_.4} parent=0 // pred_region
    _
  $region25: #{_lambda_.4} parent=0 // pred_fallthru
    _

// kernel: _lambda_.7
$region0: #{_lambda_.7}
  #allocation0 [shape = 'u32[]', space=smem, size = 0x4, offset = 0x4, fixed_abs, tag = 'smem constant byte address 0x4 - core index']
  #allocation1 [shape = 'u32[144,128]{1,0:T(1,128)}', space=vmem, size = 0x12000, scoped, tag = 'internal scratch']
  %s0 = inlined_call_operand.vmem [shape: f32[16,32], index: 0, kind: input, shape index: {}]
  %s1 = inlined_call_operand.vmem [shape: f32[16,32], index: 1, kind: input, shape index: {}]
  %s2 = inlined_call_operand.vmem [shape: f32[16,32], index: 2, kind: input, shape index: {}]
  %s3 = inlined_call_operand.vmem [shape: f32[16,32], index: 3, kind: input, shape index: {}]
  %s4 = inlined_call_operand.vmem [shape: f32[2,16,16], index: 4, kind: input, shape index: {}]
  %s5 = inlined_call_operand.vmem [shape: f32[16,16], index: 5, kind: input, shape index: {}]
  %s6 = inlined_call_operand.hbm [shape: f32[16,32], index: 6, kind: output, shape index: {}]
  %s7 = sld [smem:[#allocation0]]
  $region34: #{_lambda_.7} parent=0
    _
  %s9 = ssub.s32 1, %s7
  %s10 = scalar_select 0, %s9, %s7
  $region1: #{_lambda_.7} parent=0
    #allocation2 [shape = 'u8[8192]{0}', space=vmem, size = 0x2000, scoped, tag = 'output window, operand 0, single buffered']
    #allocation3 [shape = 's32[1]{0}', space=sflag, size = 0x4, scoped, tag = 'scoped memory for _lambda_.7']
    %11 = vsyncpa [#allocation3], 0
    // Predicated region
    $region2: #{_lambda_.7} parent=1 // pred_check
      _
    $region3: #{_lambda_.7} parent=1 // pred_check_branch
      %13 = sbr.rel (0) target = $region5
    $region4: #{_lambda_.7} parent=1 // pred_region
      _
    $region5: #{_lambda_.7} parent=1 // pred_fallthru
      _
    // Predicated region
    $region6: #{_lambda_.7} parent=1 // pred_check
      _
    $region7: #{_lambda_.7} parent=1 // pred_check_branch
      %15 = sbr.rel (0) target = $region9
    $region8: #{_lambda_.7} parent=1 // pred_region
      _
    $region9: #{_lambda_.7} parent=1 // pred_fallthru
      _
    // Predicated region
    $region10: #{_lambda_.7} parent=1 // pred_check
      _
    $region11: #{_lambda_.7} parent=1 // pred_check_branch
      %17 = sbr.rel (0) target = $region13
    $region12: #{_lambda_.7} parent=1 // pred_region
      _
    $region13: #{_lambda_.7} parent=1 // pred_fallthru
      _
    // Predicated region
    $region14: #{_lambda_.7} parent=1 // pred_check
      _
    $region15: #{_lambda_.7} parent=1 // pred_check_branch
      %19 = sbr.rel (0) target = $region17
    $region16: #{_lambda_.7} parent=1 // pred_region
      _
    $region17: #{_lambda_.7} parent=1 // pred_fallthru
      _
    // Predicated region
    $region18: #{_lambda_.7} parent=1 // pred_check
      _
    $region19: #{_lambda_.7} parent=1 // pred_check_branch
      %21 = sbr.rel (0) target = $region21
    $region20: #{_lambda_.7} parent=1 // pred_region
      _
    $region21: #{_lambda_.7} parent=1 // pred_fallthru
      _
    // Predicated region
    $region22: #{_lambda_.7} parent=1 // pred_check
      _
    $region23: #{_lambda_.7} parent=1 // pred_check_branch
      %23 = sbr.rel (0) target = $region25
    $region24: #{_lambda_.7} parent=1 // pred_region
      _
    $region25: #{_lambda_.7} parent=1 // pred_fallthru
      _
    %v25 = vld [vmem:[%s5] sm:$0xff]
    %v26 = vld [vmem:[%s5 + $0x8] sm:$0xff]
    %vm27 = vcmask 130048
    %v28 = vsel %vm27, %v25, -inf
    %29 = vmax.xlane.f32.xlu0 %v28
    %v30 = vpop.xlane.xlu0 %29
    %v31 = vsel %vm27, %v26, -inf
    %32 = vmax.xlane.f32.xlu0 %v31
    %v33 = vpop.xlane.xlu0 %32
    %vm34 = vcmp.gt.f32.partialorder %v30, 0.0
    %vm35 = vcmp.gt.f32.partialorder %v33, 0.0
    %v36 = vld [vmem:[%s0] sm:$0xff]
    %v37 = vld [vmem:[%s0 + $0x8] sm:$0xff]
    %v38 = vpack.c.bf16 %v37, %v36
    %v39 = vld [vmem:[%s1] sm:$0xff]
    %v40 = vld [vmem:[%s1 + $0x8] sm:$0xff]
    %v41 = vpack.c.bf16 %v40, %v39
    %v42 = vld [vmem:[%s2] sm:$0xff]
    %v43 = vld [vmem:[%s2 + $0x8] sm:$0xff]
    %v44 = vpack.c.bf16 %v43, %v42
    %v45 = vld [vmem:[%s3] sm:$0xff]
    %v46 = vld [vmem:[%s3 + $0x8] sm:$0xff]
    %v47 = vld [vmem:[%s4] sm:$0xff]
    %v48 = vld [vmem:[%s4 + $0x8] sm:$0xff]
    %v49 = vld [vmem:[%s4 + $0x10] sm:$0xff]
    %v50 = vld [vmem:[%s4 + $0x18] sm:$0xff]
    %v52 = vsel %vm27, %v38, 0
    %v55 = vsel %vm27, %v41, 0
    %57 = vmatprep.subr.bf16.mxu0 0
    %58 = vmatpush1.bf16.xpose.msra.mxu0 0
    %59 = vmatprep.subr.bf16.mxu0 0
    %60 = vmatpush1.bf16.xpose.msra.mxu0 0
    %61 = vmatprep.subr.bf16.mxu0 0
    %62 = vmatpush1.bf16.xpose.msra.mxu0 0
    %63 = vmatprep.subr.bf16.mxu0 0
    %64 = vmatpush1.bf16.xpose.msra.mxu0 0
    %65 = vmatprep.subr.bf16.mxu0 0
    %66 = vmatpush1.bf16.xpose.msra.mxu0 0
    %67 = vmatprep.subr.bf16.mxu0 0
    %68 = vmatpush1.bf16.xpose.msra.mxu0 0
    %69 = vmatprep.subr.bf16.mxu0 0
    %70 = vmatpush1.bf16.xpose.msra.mxu0 0
    %71 = vmatprep.subr.bf16.mxu0 0
    %72 = vmatpush1.bf16.xpose.msra.mxu0 %v55
    %73 = vmatprep.subr.bf16.mxu0 0
    %74 = vmatpush2.bf16.xpose.msra.mxu0 0
    %75 = vmatprep.subr.bf16.mxu0 0
    %76 = vmatpush2.bf16.xpose.msra.mxu0 0
    %77 = vmatprep.subr.bf16.mxu0 0
    %78 = vmatpush2.bf16.xpose.msra.mxu0 0
    %79 = vmatprep.subr.bf16.mxu0 0
    %80 = vmatpush2.bf16.xpose.msra.mxu0 0
    %81 = vmatprep.subr.bf16.mxu0 0
    %82 = vmatpush2.bf16.xpose.msra.mxu0 0
    %83 = vmatprep.subr.bf16.mxu0 0
    %84 = vmatpush2.bf16.xpose.msra.mxu0 0
    %85 = vmatprep.subr.bf16.mxu0 0
    %86 = vmatpush2.bf16.xpose.msra.mxu0 0
    %87 = vmatprep.subr.bf16.mxu0 0
    %88 = vmatpush2.bf16.xpose.msra.mxu0 0
    %89 = vmatprep.mubr.bf16.mxu0 0
    %90 = vmatmul.mubr.bf16.gmra.mxu0 %v52
    %v91 = vpop.f32.mrf.mxu0
    %v92 = vadd.f32 %v47, %v91
    %v93 = vpop.f32.mrf.mxu0
    %v94 = vpop.f32.mrf.mxu0
    %v95 = vadd.f32 %v48, %v94
    %v96 = vpop.f32.mrf.mxu0
    %97 = vdwg.mxu0
    %vm98 = vcmp.gt.f32.partialorder %v25, 0.0
    %vm99 = vcmp.gt.f32.partialorder %v26, 0.0
    %v100 = vsel %vm98, %v92, -1e+30
    %v101 = vsel %vm99, %v95, -1e+30
    %v102 = vsel %vm27, %v100, -inf
    %103 = vmax.xlane.f32.xlu0 %v102
    %v104 = vpop.xlane.xlu0 %103
    %v105 = vsel %vm27, %v101, -inf
    %106 = vmax.xlane.f32.xlu0 %v105
    %v107 = vpop.xlane.xlu0 %106
    %v108 = vsub.f32 %v100, %v104
    %v109 = vsub.f32 %v101, %v107
    %v110 = vmul.f32 %v108, 1.442695
    %v111 = vpow.pop %v110
    %v112 = vmul.f32 %v109, 1.442695
    %v113 = vpow.pop %v112
    %v114 = vsel %vm27, %v111, 0.0
    %115 = vadd.xlane.f32.xlu0 %v114
    %v116 = vpop.xlane.xlu0 %115
    %v117 = vsel %vm27, %v113, 0.0
    %118 = vadd.xlane.f32.xlu0 %v117
    %v119 = vpop.xlane.xlu0 %118
    %v120 = vrcp.pop %v116
    %v121 = vrcp.pop %v119
    %v122 = vmul.f32 %v111, %v120
    %v123 = vmul.f32 %v113, %v121
    %v124 = vpack.c.bf16 %v123, %v122
    %v126 = vsel %vm27, %v124, 0
    %128 = vmatprep.subr.bf16.mxu0 0
    %129 = vmatpush1.bf16.msra.mxu0 0
    %130 = vmatprep.subr.bf16.mxu0 0
    %131 = vmatpush1.bf16.msra.mxu0 0
    %132 = vmatprep.subr.bf16.mxu0 0
    %133 = vmatpush1.bf16.msra.mxu0 0
    %134 = vmatprep.subr.bf16.mxu0 0
    %135 = vmatpush1.bf16.msra.mxu0 0
    %136 = vmatprep.subr.bf16.mxu0 0
    %137 = vmatpush1.bf16.msra.mxu0 0
    %138 = vmatprep.subr.bf16.mxu0 0
    %139 = vmatpush1.bf16.msra.mxu0 0
    %140 = vmatprep.subr.bf16.mxu0 0
    %141 = vmatpush1.bf16.msra.mxu0 0
    %142 = vmatprep.subr.bf16.mxu0 0
    %143 = vmatpush1.bf16.msra.mxu0 %v44
    %144 = vmatprep.subr.bf16.mxu0 0
    %145 = vmatpush2.bf16.msra.mxu0 0
    %146 = vmatprep.subr.bf16.mxu0 0
    %147 = vmatpush2.bf16.msra.mxu0 0
    %148 = vmatprep.subr.bf16.mxu0 0
    %149 = vmatpush2.bf16.msra.mxu0 0
    %150 = vmatprep.subr.bf16.mxu0 0
    %151 = vmatpush2.bf16.msra.mxu0 0
    %152 = vmatprep.subr.bf16.mxu0 0
    %153 = vmatpush2.bf16.msra.mxu0 0
    %154 = vmatprep.subr.bf16.mxu0 0
    %155 = vmatpush2.bf16.msra.mxu0 0
    %156 = vmatprep.subr.bf16.mxu0 0
    %157 = vmatpush2.bf16.msra.mxu0 0
    %158 = vmatprep.subr.bf16.mxu0 0
    %159 = vmatpush2.bf16.msra.mxu0 0
    %160 = vmatprep.mubr.bf16.mxu0 0
    %161 = vmatmul.mubr.bf16.gmra.mxu0 %v126
    %v162 = vpop.f32.mrf.mxu0
    %v163 = vadd.f32 0.0, %v162
    %v164 = vpop.f32.mrf.mxu0
    %v165 = vpop.f32.mrf.mxu0
    %v166 = vadd.f32 0.0, %v165
    %v167 = vpop.f32.mrf.mxu0
    %168 = vdwg.mxu0
    %v169 = vsel %vm34, 1, 0
    %v170 = vsel %vm35, 1, 0
    %vm171 = vcmp.eq.s32.totalorder %v169, 1
    %vm172 = vcmp.eq.s32.totalorder %v170, 1
    %v173 = vsel %vm171, %v163, 0.0
    %v174 = vsel %vm172, %v166, 0.0
    %v175 = vadd.f32 %v173, %v45
    %v176 = vadd.f32 %v174, %v46
    %177 = vst.msk [vmem:[#allocation2] sm:$0xff] %vm27, %v175
    %178 = vst.msk [vmem:[#allocation2 + $0x8] sm:$0xff] %vm27, %v176
    %180 = vrot.lane.b32.xlu0 %v38, 112
    %v181 = vpop.permute.xlu0 %180
    %183 = vrot.lane.b32.xlu0 %v41, 112
    %v184 = vpop.permute.xlu0 %183
    %v186 = vsel %vm27, %v181, 0
    %v189 = vsel %vm27, %v184, 0
    %191 = vmatprep.subr.bf16.mxu0 0
    %192 = vmatpush1.bf16.xpose.msra.mxu0 0
    %193 = vmatprep.subr.bf16.mxu0 0
    %194 = vmatpush1.bf16.xpose.msra.mxu0 0
    %195 = vmatprep.subr.bf16.mxu0 0
    %196 = vmatpush1.bf16.xpose.msra.mxu0 0
    %197 = vmatprep.subr.bf16.mxu0 0
    %198 = vmatpush1.bf16.xpose.msra.mxu0 0
    %199 = vmatprep.subr.bf16.mxu0 0
    %200 = vmatpush1.bf16.xpose.msra.mxu0 0
    %201 = vmatprep.subr.bf16.mxu0 0
    %202 = vmatpush1.bf16.xpose.msra.mxu0 0
    %203 = vmatprep.subr.bf16.mxu0 0
    %204 = vmatpush1.bf16.xpose.msra.mxu0 0
    %205 = vmatprep.subr.bf16.mxu0 0
    %206 = vmatpush1.bf16.xpose.msra.mxu0 %v189
    %207 = vmatprep.subr.bf16.mxu0 0
    %208 = vmatpush2.bf16.xpose.msra.mxu0 0
    %209 = vmatprep.subr.bf16.mxu0 0
    %210 = vmatpush2.bf16.xpose.msra.mxu0 0
    %211 = vmatprep.subr.bf16.mxu0 0
    %212 = vmatpush2.bf16.xpose.msra.mxu0 0
    %213 = vmatprep.subr.bf16.mxu0 0
    %214 = vmatpush2.bf16.xpose.msra.mxu0 0
    %215 = vmatprep.subr.bf16.mxu0 0
    %216 = vmatpush2.bf16.xpose.msra.mxu0 0
    %217 = vmatprep.subr.bf16.mxu0 0
    %218 = vmatpush2.bf16.xpose.msra.mxu0 0
    %219 = vmatprep.subr.bf16.mxu0 0
    %220 = vmatpush2.bf16.xpose.msra.mxu0 0
    %221 = vmatprep.subr.bf16.mxu0 0
    %222 = vmatpush2.bf16.xpose.msra.mxu0 0
    %223 = vmatprep.mubr.bf16.mxu0 0
    %224 = vmatmul.mubr.bf16.gmra.mxu0 %v186
    %v225 = vpop.f32.mrf.mxu0
    %v226 = vadd.f32 %v49, %v225
    %v227 = vpop.f32.mrf.mxu0
    %v228 = vpop.f32.mrf.mxu0
    %v229 = vadd.f32 %v50, %v228
    %v230 = vpop.f32.mrf.mxu0
    %231 = vdwg.mxu0
    %v232 = vsel %vm98, %v226, -1e+30
    %v233 = vsel %vm99, %v229, -1e+30
    %v234 = vsel %vm27, %v232, -inf
    %235 = vmax.xlane.f32.xlu0 %v234
    %v236 = vpop.xlane.xlu0 %235
    %v237 = vsel %vm27, %v233, -inf
    %238 = vmax.xlane.f32.xlu0 %v237
    %v239 = vpop.xlane.xlu0 %238
    %v240 = vsub.f32 %v232, %v236
    %v241 = vsub.f32 %v233, %v239
    %v242 = vmul.f32 %v240, 1.442695
    %v243 = vpow.pop %v242
    %v244 = vmul.f32 %v241, 1.442695
    %v245 = vpow.pop %v244
    %v246 = vsel %vm27, %v243, 0.0
    %247 = vadd.xlane.f32.xlu0 %v246
    %v248 = vpop.xlane.xlu0 %247
    %v249 = vsel %vm27, %v245, 0.0
    %250 = vadd.xlane.f32.xlu0 %v249
    %v251 = vpop.xlane.xlu0 %250
    %v252 = vrcp.pop %v248
    %v253 = vrcp.pop %v251
    %v254 = vmul.f32 %v243, %v252
    %v255 = vmul.f32 %v245, %v253
    %v256 = vpack.c.bf16 %v255, %v254
    %258 = vrot.lane.b32.xlu0 %v44, 112
    %v259 = vpop.permute.xlu0 %258
    %v262 = vsel %vm27, %v256, 0
    %264 = vmatprep.subr.bf16.mxu0 0
    %265 = vmatpush1.bf16.msra.mxu0 0
    %266 = vmatprep.subr.bf16.mxu0 0
    %267 = vmatpush1.bf16.msra.mxu0 0
    %268 = vmatprep.subr.bf16.mxu0 0
    %269 = vmatpush1.bf16.msra.mxu0 0
    %270 = vmatprep.subr.bf16.mxu0 0
    %271 = vmatpush1.bf16.msra.mxu0 0
    %272 = vmatprep.subr.bf16.mxu0 0
    %273 = vmatpush1.bf16.msra.mxu0 0
    %274 = vmatprep.subr.bf16.mxu0 0
    %275 = vmatpush1.bf16.msra.mxu0 0
    %276 = vmatprep.subr.bf16.mxu0 0
    %277 = vmatpush1.bf16.msra.mxu0 0
    %278 = vmatprep.subr.bf16.mxu0 0
    %279 = vmatpush1.bf16.msra.mxu0 %v259
    %280 = vmatprep.subr.bf16.mxu0 0
    %281 = vmatpush2.bf16.msra.mxu0 0
    %282 = vmatprep.subr.bf16.mxu0 0
    %283 = vmatpush2.bf16.msra.mxu0 0
    %284 = vmatprep.subr.bf16.mxu0 0
    %285 = vmatpush2.bf16.msra.mxu0 0
    %286 = vmatprep.subr.bf16.mxu0 0
    %287 = vmatpush2.bf16.msra.mxu0 0
    %288 = vmatprep.subr.bf16.mxu0 0
    %289 = vmatpush2.bf16.msra.mxu0 0
    %290 = vmatprep.subr.bf16.mxu0 0
    %291 = vmatpush2.bf16.msra.mxu0 0
    %292 = vmatprep.subr.bf16.mxu0 0
    %293 = vmatpush2.bf16.msra.mxu0 0
    %294 = vmatprep.subr.bf16.mxu0 0
    %295 = vmatpush2.bf16.msra.mxu0 0
    %296 = vmatprep.mubr.bf16.mxu0 0
    %297 = vmatmul.mubr.bf16.gmra.mxu0 %v262
    %v298 = vpop.f32.mrf.mxu0
    %v299 = vadd.f32 0.0, %v298
    %v300 = vpop.f32.mrf.mxu0
    %v301 = vpop.f32.mrf.mxu0
    %v302 = vadd.f32 0.0, %v301
    %v303 = vpop.f32.mrf.mxu0
    %304 = vdwg.mxu0
    %v305 = vsel %vm171, %v299, 0.0
    %v306 = vsel %vm172, %v302, 0.0
    %309 = vrot.lane.b32.xlu0 %v45, 112
    %v310 = vpop.permute.xlu0 %309
    %311 = vrot.lane.b32.xlu0 %v46, 112
    %v312 = vpop.permute.xlu0 %311
    %v315 = vadd.f32 %v305, %v310
    %v316 = vadd.f32 %v306, %v312
    %319 = vrot.lane.b32.xlu0 %v315, 16
    %v320 = vpop.permute.xlu0 %319
    %321 = vrot.lane.b32.xlu0 %v316, 16
    %v322 = vpop.permute.xlu0 %321
    %vm325 = vcmask 261248
    %326 = vst.msk [vmem:[#allocation2] sm:$0xff] %vm325, %v320
    %327 = vst.msk [vmem:[#allocation2 + $0x8] sm:$0xff] %vm325, %v322
    // Predicated region
    $region26: #{_lambda_.7} parent=1 // pred_check
      _
    $region27: #{_lambda_.7} parent=1 // pred_check_branch
      %329 = sbr.rel (0) target = $region29
    $region28: #{_lambda_.7} parent=1 // pred_region
      %s331 = ssub.s32 256, 256
      %332 = vsyncadd [#allocation3], %s331
      %s333 = sshll.u32 [#allocation2], 4
      %s334 = int_to_ptr.vmem [resolvable:$true] %s333
      %339 = dma.vmem_to_hbm [thread:$0]  %s334, 256, %s6, [#allocation3], 128, 128, 8
    $region29: #{_lambda_.7} parent=1 // pred_fallthru
      _
    // Predicated region
    $region30: #{_lambda_.7} parent=1 // pred_check
      _
    $region31: #{_lambda_.7} parent=1 // pred_check_branch
      %341 = sbr.rel (0) target = $region33
    $region32: #{_lambda_.7} parent=1 // pred_region
      %342 = dma.done [#allocation3], 256
    $region33: #{_lambda_.7} parent=1 // pred_fallthru
      _
    %343 = vsyncpa [#allocation3], 1

// kernel: _lambda_.5
$region0: #{_lambda_.5}
  #allocation0 [shape = 'u32[]', space=smem, size = 0x4, offset = 0x4, fixed_abs, tag = 'smem constant byte address 0x4 - core index']
  #allocation1 [shape = 'u32[144,128]{1,0:T(1,128)}', space=vmem, size = 0x12000, scoped, tag = 'internal scratch']
  %s0 = inlined_call_operand.vmem [shape: f32[16,32], index: 0, kind: input, shape index: {}]
  %s1 = inlined_call_operand.vmem [shape: f32[16,32], index: 1, kind: input, shape index: {}]
  %s2 = inlined_call_operand.vmem [shape: f32[16,32], index: 2, kind: input, shape index: {}]
  %s3 = inlined_call_operand.vmem [shape: f32[16,32], index: 3, kind: input, shape index: {}]
  %s4 = inlined_call_operand.vmem [shape: f32[2,16,16], index: 4, kind: input, shape index: {}]
  %s5 = inlined_call_operand.vmem [shape: f32[16,16], index: 5, kind: input, shape index: {}]
  %s6 = inlined_call_operand.vmem [shape: f32[16,32], index: 6, kind: output, shape index: {}]
  %s7 = sld [smem:[#allocation0]]
  $region34: #{_lambda_.5} parent=0
    _
  %s9 = ssub.s32 1, %s7
  %s10 = scalar_select 0, %s9, %s7
  // Predicated region
  $region2: #{_lambda_.5} parent=0 // pred_check
    _
  $region3: #{_lambda_.5} parent=0 // pred_check_branch
    %12 = sbr.rel (0) target = $region5
  $region4: #{_lambda_.5} parent=0 // pred_region
    _
  $region5: #{_lambda_.5} parent=0 // pred_fallthru
    _
  // Predicated region
  $region6: #{_lambda_.5} parent=0 // pred_check
    _
  $region7: #{_lambda_.5} parent=0 // pred_check_branch
    %14 = sbr.rel (0) target = $region9
  $region8: #{_lambda_.5} parent=0 // pred_region
    _
  $region9: #{_lambda_.5} parent=0 // pred_fallthru
    _
  // Predicated region
  $region10: #{_lambda_.5} parent=0 // pred_check
    _
  $region11: #{_lambda_.5} parent=0 // pred_check_branch
    %16 = sbr.rel (0) target = $region13
  $region12: #{_lambda_.5} parent=0 // pred_region
    _
  $region13: #{_lambda_.5} parent=0 // pred_fallthru
    _
  // Predicated region
  $region14: #{_lambda_.5} parent=0 // pred_check
    _
  $region15: #{_lambda_.5} parent=0 // pred_check_branch
    %18 = sbr.rel (0) target = $region17
  $region16: #{_lambda_.5} parent=0 // pred_region
    _
  $region17: #{_lambda_.5} parent=0 // pred_fallthru
    _
  // Predicated region
  $region18: #{_lambda_.5} parent=0 // pred_check
    _
  $region19: #{_lambda_.5} parent=0 // pred_check_branch
    %20 = sbr.rel (0) target = $region21
  $region20: #{_lambda_.5} parent=0 // pred_region
    _
  $region21: #{_lambda_.5} parent=0 // pred_fallthru
    _
  // Predicated region
  $region22: #{_lambda_.5} parent=0 // pred_check
    _
  $region23: #{_lambda_.5} parent=0 // pred_check_branch
    %22 = sbr.rel (0) target = $region25
  $region24: #{_lambda_.5} parent=0 // pred_region
    _
  $region25: #{_lambda_.5} parent=0 // pred_fallthru
    _
  %v24 = vld [vmem:[%s5] sm:$0xff]
  %v25 = vld [vmem:[%s5 + $0x8] sm:$0xff]
  %vm26 = vcmask 130048
  %v27 = vsel %vm26, %v24, -inf
  %28 = vmax.xlane.f32.xlu0 %v27
  %v29 = vpop.xlane.xlu0 %28
  %v30 = vsel %vm26, %v25, -inf
  %31 = vmax.xlane.f32.xlu0 %v30
  %v32 = vpop.xlane.xlu0 %31
  %vm33 = vcmp.gt.f32.partialorder %v29, 0.0
  %vm34 = vcmp.gt.f32.partialorder %v32, 0.0
  %v35 = vld [vmem:[%s0] sm:$0xff]
  %v36 = vld [vmem:[%s0 + $0x8] sm:$0xff]
  %v37 = vpack.c.bf16 %v36, %v35
  %v38 = vld [vmem:[%s1] sm:$0xff]
  %v39 = vld [vmem:[%s1 + $0x8] sm:$0xff]
  %v40 = vpack.c.bf16 %v39, %v38
  %v41 = vld [vmem:[%s2] sm:$0xff]
  %v42 = vld [vmem:[%s2 + $0x8] sm:$0xff]
  %v43 = vpack.c.bf16 %v42, %v41
  %v44 = vld [vmem:[%s3] sm:$0xff]
  %v45 = vld [vmem:[%s3 + $0x8] sm:$0xff]
  %v46 = vld [vmem:[%s4] sm:$0xff]
  %v47 = vld [vmem:[%s4 + $0x8] sm:$0xff]
  %v48 = vld [vmem:[%s4 + $0x10] sm:$0xff]
  %v49 = vld [vmem:[%s4 + $0x18] sm:$0xff]
  %v51 = vsel %vm26, %v37, 0
  %v54 = vsel %vm26, %v40, 0
  %56 = vmatprep.subr.bf16.mxu0 0
  %57 = vmatpush1.bf16.xpose.msra.mxu0 0
  %58 = vmatprep.subr.bf16.mxu0 0
  %59 = vmatpush1.bf16.xpose.msra.mxu0 0
  %60 = vmatprep.subr.bf16.mxu0 0
  %61 = vmatpush1.bf16.xpose.msra.mxu0 0
  %62 = vmatprep.subr.bf16.mxu0 0
  %63 = vmatpush1.bf16.xpose.msra.mxu0 0
  %64 = vmatprep.subr.bf16.mxu0 0
  %65 = vmatpush1.bf16.xpose.msra.mxu0 0
  %66 = vmatprep.subr.bf16.mxu0 0
  %67 = vmatpush1.bf16.xpose.msra.mxu0 0
  %68 = vmatprep.subr.bf16.mxu0 0
  %69 = vmatpush1.bf16.xpose.msra.mxu0 0
  %70 = vmatprep.subr.bf16.mxu0 0
  %71 = vmatpush1.bf16.xpose.msra.mxu0 %v54
  %72 = vmatprep.subr.bf16.mxu0 0
  %73 = vmatpush2.bf16.xpose.msra.mxu0 0
  %74 = vmatprep.subr.bf16.mxu0 0
  %75 = vmatpush2.bf16.xpose.msra.mxu0 0
  %76 = vmatprep.subr.bf16.mxu0 0
  %77 = vmatpush2.bf16.xpose.msra.mxu0 0
  %78 = vmatprep.subr.bf16.mxu0 0
  %79 = vmatpush2.bf16.xpose.msra.mxu0 0
  %80 = vmatprep.subr.bf16.mxu0 0
  %81 = vmatpush2.bf16.xpose.msra.mxu0 0
  %82 = vmatprep.subr.bf16.mxu0 0
  %83 = vmatpush2.bf16.xpose.msra.mxu0 0
  %84 = vmatprep.subr.bf16.mxu0 0
  %85 = vmatpush2.bf16.xpose.msra.mxu0 0
  %86 = vmatprep.subr.bf16.mxu0 0
  %87 = vmatpush2.bf16.xpose.msra.mxu0 0
  %88 = vmatprep.mubr.bf16.mxu0 0
  %89 = vmatmul.mubr.bf16.gmra.mxu0 %v51
  %v90 = vpop.f32.mrf.mxu0
  %v91 = vadd.f32 %v46, %v90
  %v92 = vpop.f32.mrf.mxu0
  %v93 = vpop.f32.mrf.mxu0
  %v94 = vadd.f32 %v47, %v93
  %v95 = vpop.f32.mrf.mxu0
  %96 = vdwg.mxu0
  %vm97 = vcmp.gt.f32.partialorder %v24, 0.0
  %vm98 = vcmp.gt.f32.partialorder %v25, 0.0
  %v99 = vsel %vm97, %v91, -1e+30
  %v100 = vsel %vm98, %v94, -1e+30
  %v101 = vsel %vm26, %v99, -inf
  %102 = vmax.xlane.f32.xlu0 %v101
  %v103 = vpop.xlane.xlu0 %102
  %v104 = vsel %vm26, %v100, -inf
  %105 = vmax.xlane.f32.xlu0 %v104
  %v106 = vpop.xlane.xlu0 %105
  %v107 = vsub.f32 %v99, %v103
  %v108 = vsub.f32 %v100, %v106
  %v109 = vmul.f32 %v107, 1.442695
  %v110 = vpow.pop %v109
  %v111 = vmul.f32 %v108, 1.442695
  %v112 = vpow.pop %v111
  %v113 = vsel %vm26, %v110, 0.0
  %114 = vadd.xlane.f32.xlu0 %v113
  %v115 = vpop.xlane.xlu0 %114
  %v116 = vsel %vm26, %v112, 0.0
  %117 = vadd.xlane.f32.xlu0 %v116
  %v118 = vpop.xlane.xlu0 %117
  %v119 = vrcp.pop %v115
  %v120 = vrcp.pop %v118
  %v121 = vmul.f32 %v110, %v119
  %v122 = vmul.f32 %v112, %v120
  %v123 = vpack.c.bf16 %v122, %v121
  %v125 = vsel %vm26, %v123, 0
  %127 = vmatprep.subr.bf16.mxu0 0
  %128 = vmatpush1.bf16.msra.mxu0 0
  %129 = vmatprep.subr.bf16.mxu0 0
  %130 = vmatpush1.bf16.msra.mxu0 0
  %131 = vmatprep.subr.bf16.mxu0 0
  %132 = vmatpush1.bf16.msra.mxu0 0
  %133 = vmatprep.subr.bf16.mxu0 0
  %134 = vmatpush1.bf16.msra.mxu0 0
  %135 = vmatprep.subr.bf16.mxu0 0
  %136 = vmatpush1.bf16.msra.mxu0 0
  %137 = vmatprep.subr.bf16.mxu0 0
  %138 = vmatpush1.bf16.msra.mxu0 0
  %139 = vmatprep.subr.bf16.mxu0 0
  %140 = vmatpush1.bf16.msra.mxu0 0
  %141 = vmatprep.subr.bf16.mxu0 0
  %142 = vmatpush1.bf16.msra.mxu0 %v43
  %143 = vmatprep.subr.bf16.mxu0 0
  %144 = vmatpush2.bf16.msra.mxu0 0
  %145 = vmatprep.subr.bf16.mxu0 0
  %146 = vmatpush2.bf16.msra.mxu0 0
  %147 = vmatprep.subr.bf16.mxu0 0
  %148 = vmatpush2.bf16.msra.mxu0 0
  %149 = vmatprep.subr.bf16.mxu0 0
  %150 = vmatpush2.bf16.msra.mxu0 0
  %151 = vmatprep.subr.bf16.mxu0 0
  %152 = vmatpush2.bf16.msra.mxu0 0
  %153 = vmatprep.subr.bf16.mxu0 0
  %154 = vmatpush2.bf16.msra.mxu0 0
  %155 = vmatprep.subr.bf16.mxu0 0
  %156 = vmatpush2.bf16.msra.mxu0 0
  %157 = vmatprep.subr.bf16.mxu0 0
  %158 = vmatpush2.bf16.msra.mxu0 0
  %159 = vmatprep.mubr.bf16.mxu0 0
  %160 = vmatmul.mubr.bf16.gmra.mxu0 %v125
  %v161 = vpop.f32.mrf.mxu0
  %v162 = vadd.f32 0.0, %v161
  %v163 = vpop.f32.mrf.mxu0
  %v164 = vpop.f32.mrf.mxu0
  %v165 = vadd.f32 0.0, %v164
  %v166 = vpop.f32.mrf.mxu0
  %167 = vdwg.mxu0
  %v168 = vsel %vm33, 1, 0
  %v169 = vsel %vm34, 1, 0
  %vm170 = vcmp.eq.s32.totalorder %v168, 1
  %vm171 = vcmp.eq.s32.totalorder %v169, 1
  %v172 = vsel %vm170, %v162, 0.0
  %v173 = vsel %vm171, %v165, 0.0
  %v174 = vadd.f32 %v172, %v44
  %v175 = vadd.f32 %v173, %v45
  %176 = vst.msk [vmem:[%s6] sm:$0xff] %vm26, %v174
  %177 = vst.msk [vmem:[%s6 + $0x8] sm:$0xff] %vm26, %v175
  %179 = vrot.lane.b32.xlu0 %v37, 112
  %v180 = vpop.permute.xlu0 %179
  %182 = vrot.lane.b32.xlu0 %v40, 112
  %v183 = vpop.permute.xlu0 %182
  %v185 = vsel %vm26, %v180, 0
  %v188 = vsel %vm26, %v183, 0
  %190 = vmatprep.subr.bf16.mxu0 0
  %191 = vmatpush1.bf16.xpose.msra.mxu0 0
  %192 = vmatprep.subr.bf16.mxu0 0
  %193 = vmatpush1.bf16.xpose.msra.mxu0 0
  %194 = vmatprep.subr.bf16.mxu0 0
  %195 = vmatpush1.bf16.xpose.msra.mxu0 0
  %196 = vmatprep.subr.bf16.mxu0 0
  %197 = vmatpush1.bf16.xpose.msra.mxu0 0
  %198 = vmatprep.subr.bf16.mxu0 0
  %199 = vmatpush1.bf16.xpose.msra.mxu0 0
  %200 = vmatprep.subr.bf16.mxu0 0
  %201 = vmatpush1.bf16.xpose.msra.mxu0 0
  %202 = vmatprep.subr.bf16.mxu0 0
  %203 = vmatpush1.bf16.xpose.msra.mxu0 0
  %204 = vmatprep.subr.bf16.mxu0 0
  %205 = vmatpush1.bf16.xpose.msra.mxu0 %v188
  %206 = vmatprep.subr.bf16.mxu0 0
  %207 = vmatpush2.bf16.xpose.msra.mxu0 0
  %208 = vmatprep.subr.bf16.mxu0 0
  %209 = vmatpush2.bf16.xpose.msra.mxu0 0
  %210 = vmatprep.subr.bf16.mxu0 0
  %211 = vmatpush2.bf16.xpose.msra.mxu0 0
  %212 = vmatprep.subr.bf16.mxu0 0
  %213 = vmatpush2.bf16.xpose.msra.mxu0 0
  %214 = vmatprep.subr.bf16.mxu0 0
  %215 = vmatpush2.bf16.xpose.msra.mxu0 0
  %216 = vmatprep.subr.bf16.mxu0 0
  %217 = vmatpush2.bf16.xpose.msra.mxu0 0
  %218 = vmatprep.subr.bf16.mxu0 0
  %219 = vmatpush2.bf16.xpose.msra.mxu0 0
  %220 = vmatprep.subr.bf16.mxu0 0
  %221 = vmatpush2.bf16.xpose.msra.mxu0 0
  %222 = vmatprep.mubr.bf16.mxu0 0
  %223 = vmatmul.mubr.bf16.gmra.mxu0 %v185
  %v224 = vpop.f32.mrf.mxu0
  %v225 = vadd.f32 %v48, %v224
  %v226 = vpop.f32.mrf.mxu0
  %v227 = vpop.f32.mrf.mxu0
  %v228 = vadd.f32 %v49, %v227
  %v229 = vpop.f32.mrf.mxu0
  %230 = vdwg.mxu0
  %v231 = vsel %vm97, %v225, -1e+30
  %v232 = vsel %vm98, %v228, -1e+30
  %v233 = vsel %vm26, %v231, -inf
  %234 = vmax.xlane.f32.xlu0 %v233
  %v235 = vpop.xlane.xlu0 %234
  %v236 = vsel %vm26, %v232, -inf
  %237 = vmax.xlane.f32.xlu0 %v236
  %v238 = vpop.xlane.xlu0 %237
  %v239 = vsub.f32 %v231, %v235
  %v240 = vsub.f32 %v232, %v238
  %v241 = vmul.f32 %v239, 1.442695
  %v242 = vpow.pop %v241
  %v243 = vmul.f32 %v240, 1.442695
  %v244 = vpow.pop %v243
  %v245 = vsel %vm26, %v242, 0.0
  %246 = vadd.xlane.f32.xlu0 %v245
  %v247 = vpop.xlane.xlu0 %246
  %v248 = vsel %vm26, %v244, 0.0
  %249 = vadd.xlane.f32.xlu0 %v248
  %v250 = vpop.xlane.xlu0 %249
  %v251 = vrcp.pop %v247
  %v252 = vrcp.pop %v250
  %v253 = vmul.f32 %v242, %v251
  %v254 = vmul.f32 %v244, %v252
  %v255 = vpack.c.bf16 %v254, %v253
  %257 = vrot.lane.b32.xlu0 %v43, 112
  %v258 = vpop.permute.xlu0 %257
  %v261 = vsel %vm26, %v255, 0
  %263 = vmatprep.subr.bf16.mxu0 0
  %264 = vmatpush1.bf16.msra.mxu0 0
  %265 = vmatprep.subr.bf16.mxu0 0
  %266 = vmatpush1.bf16.msra.mxu0 0
  %267 = vmatprep.subr.bf16.mxu0 0
  %268 = vmatpush1.bf16.msra.mxu0 0
  %269 = vmatprep.subr.bf16.mxu0 0
  %270 = vmatpush1.bf16.msra.mxu0 0
  %271 = vmatprep.subr.bf16.mxu0 0
  %272 = vmatpush1.bf16.msra.mxu0 0
  %273 = vmatprep.subr.bf16.mxu0 0
  %274 = vmatpush1.bf16.msra.mxu0 0
  %275 = vmatprep.subr.bf16.mxu0 0
  %276 = vmatpush1.bf16.msra.mxu0 0
  %277 = vmatprep.subr.bf16.mxu0 0
  %278 = vmatpush1.bf16.msra.mxu0 %v258
  %279 = vmatprep.subr.bf16.mxu0 0
  %280 = vmatpush2.bf16.msra.mxu0 0
  %281 = vmatprep.subr.bf16.mxu0 0
  %282 = vmatpush2.bf16.msra.mxu0 0
  %283 = vmatprep.subr.bf16.mxu0 0
  %284 = vmatpush2.bf16.msra.mxu0 0
  %285 = vmatprep.subr.bf16.mxu0 0
  %286 = vmatpush2.bf16.msra.mxu0 0
  %287 = vmatprep.subr.bf16.mxu0 0
  %288 = vmatpush2.bf16.msra.mxu0 0
  %289 = vmatprep.subr.bf16.mxu0 0
  %290 = vmatpush2.bf16.msra.mxu0 0
  %291 = vmatprep.subr.bf16.mxu0 0
  %292 = vmatpush2.bf16.msra.mxu0 0
  %293 = vmatprep.subr.bf16.mxu0 0
  %294 = vmatpush2.bf16.msra.mxu0 0
  %295 = vmatprep.mubr.bf16.mxu0 0
  %296 = vmatmul.mubr.bf16.gmra.mxu0 %v261
  %v297 = vpop.f32.mrf.mxu0
  %v298 = vadd.f32 0.0, %v297
  %v299 = vpop.f32.mrf.mxu0
  %v300 = vpop.f32.mrf.mxu0
  %v301 = vadd.f32 0.0, %v300
  %v302 = vpop.f32.mrf.mxu0
  %303 = vdwg.mxu0
  %v304 = vsel %vm170, %v298, 0.0
  %v305 = vsel %vm171, %v301, 0.0
  %308 = vrot.lane.b32.xlu0 %v44, 112
  %v309 = vpop.permute.xlu0 %308
  %310 = vrot.lane.b32.xlu0 %v45, 112
  %v311 = vpop.permute.xlu0 %310
  %v314 = vadd.f32 %v304, %v309
  %v315 = vadd.f32 %v305, %v311
  %318 = vrot.lane.b32.xlu0 %v314, 16
  %v319 = vpop.permute.xlu0 %318
  %320 = vrot.lane.b32.xlu0 %v315, 16
  %v321 = vpop.permute.xlu0 %320
  %vm324 = vcmask 261248
  %325 = vst.msk [vmem:[%s6] sm:$0xff] %vm324, %v319
  %326 = vst.msk [vmem:[%s6 + $0x8] sm:$0xff] %vm324, %v321
  // Predicated region
  $region26: #{_lambda_.5} parent=0 // pred_check
    _
  $region27: #{_lambda_.5} parent=0 // pred_check_branch
    %328 = sbr.rel (0) target = $region29
  $region28: #{_lambda_.5} parent=0 // pred_region
    _
  $region29: #{_lambda_.5} parent=0 // pred_fallthru
    _
  // Predicated region
  $region30: #{_lambda_.5} parent=0 // pred_check
    _
  $region31: #{_lambda_.5} parent=0 // pred_check_branch
    %330 = sbr.rel (0) target = $region33
  $region32: #{_lambda_.5} parent=0 // pred_region
    _
  $region33: #{_lambda_.5} parent=0 // pred_fallthru
    _

</llo_original>
